<compile_context>
chip_gen: v6e
topology: v6e:2x2x1
jax: 0.10.0
libtpu: 0.0.40
codegen_flags: <defaults>
</compile_context>

<pallas_src>
import jax
import jax.numpy as jnp
from jax.experimental import pallas as pl
from jax.experimental.pallas import tpu as pltpu


_TARGET_BLOCK_BYTES = 2 * 1024 * 1024  # per-operand block budget


def _choose_block(rows, cols, itemsize):
    """Pick (block_rows, block_cols) obeying the (8, 128) tiling rules
    (divisible-by or equal-to-full-dim) while keeping each operand block
    under ~2 MiB so double-buffered pipelining fits v7x's scoped VMEM."""
    max_elems = max(1, _TARGET_BLOCK_BYTES // itemsize)
    if rows * cols <= max_elems:
        return rows, cols                       # whole array in one block
    if cols * 8 <= max_elems:
        block_cols = cols                       # keep full (lane-dense) width
    else:
        block_cols = max(128, (max_elems // 8) // 128 * 128)
    block_rows = max_elems // block_cols
    if block_rows >= rows or rows <= 8:
        block_rows = rows
    else:
        block_rows = max(8, (block_rows // 8) * 8)
    return block_rows, block_cols


def _add_kernel(x1_ref, x2_ref, o_ref):
    # Pure element-wise add: one full-tile, unmasked store. No RMW on o_ref.
    o_ref[...] = x1_ref[...] + x2_ref[...]


@jax.jit
def pallas_sum(x1, x2):
    """Pallas equivalent of Sum().forward(x1, x2) for NCHW inputs."""
    n1, c1, h1, w1 = x1.shape
    n2, c2, h2, w2 = x2.shape
    assert (n1, c1) == (n2, c2), "batch/channel dims must match"
    diff_y = h2 - h1
    diff_x = w2 - w1
    assert diff_y >= 0 and diff_x >= 0, "x2 spatial dims must be >= x1's"

    out_dtype = jnp.result_type(x1.dtype, x2.dtype)

    # Asymmetric spatial zero-pad of x1 (same semantics as F.pad in the module).
    x1p = jnp.pad(
        x1.astype(out_dtype),
        ((0, 0), (0, 0),
         (diff_y // 2, diff_y - diff_y // 2),
         (diff_x // 2, diff_x - diff_x // 2)),
    )
    x2c = x2.astype(out_dtype)

    # Lane-dense flat layout: last dim = H2*W2, rows = N*C.
    rows, cols = n1 * c1, h2 * w2
    x1f = x1p.reshape(rows, cols)
    x2f = x2c.reshape(rows, cols)

    itemsize = jnp.dtype(out_dtype).itemsize
    block_rows, block_cols = _choose_block(rows, cols, itemsize)
    grid = (pl.cdiv(rows, block_rows), pl.cdiv(cols, block_cols))

    spec = pl.BlockSpec((block_rows, block_cols), lambda i, j: (i, j))

    out_flat = pl.pallas_call(
        _add_kernel,
        out_shape=jax.ShapeDtypeStruct((rows, cols), out_dtype),
        grid_spec=pl.GridSpec(
            grid=grid,
            in_specs=[spec, spec],
            out_specs=spec,
        ),
        # Reuse x2's (flattened) buffer for the output: no extra HBM allocation.
        input_output_aliases={1: 0},
        compiler_params=pltpu.CompilerParams(
            dimension_semantics=("parallel", "parallel"),
            vmem_limit_bytes=32 * 1024 * 1024,
        ),
    )(x1f, x2f)

    return out_flat.reshape(n2, c2, h2, w2)


def reference_sum(x1, x2):
    """Pure-JAX reference matching the PyTorch semantics."""
    diff_y = x2.shape[2] - x1.shape[2]
    diff_x = x2.shape[3] - x1.shape[3]
    x1p = jnp.pad(
        x1,
        ((0, 0), (0, 0),
         (diff_y // 2, diff_y - diff_y // 2),
         (diff_x // 2, diff_x - diff_x // 2)),
    )
    return x1p + x2


if __name__ == "__main__":
    key = jax.random.PRNGKey(0)
    k1, k2 = jax.random.split(key)

    # x1 spatially smaller than x2 (asymmetric pad: diffY=3, diffX=1).
    x1 = jax.random.normal(k1, (2, 4, 13, 15), dtype=jnp.float32)
    x2 = jax.random.normal(k2, (2, 4, 16, 16), dtype=jnp.float32)

    ref = reference_sum(x1, x2)

    out = pallas_sum(x1, x2)
    out = jax.block_until_ready(out)

    assert out.shape == ref.shape and out.dtype == ref.dtype
    assert jnp.allclose(out, ref, atol=1e-6, rtol=1e-6), "mismatch vs reference"

    print("KERNEL_OK")
</pallas_src>

<mosaic_0001>
module attributes {stable_mosaic.version = 11 : i64} {
  func.func @_add_kernel(%arg0: i32, %arg1: i32, %arg2: memref<8x256xf32, #tpu.memory_space<vmem>>, %arg3: memref<8x256xf32, #tpu.memory_space<vmem>>, %arg4: memref<8x256xf32, #tpu.memory_space<vmem>>) attributes {dimension_semantics = [#tpu.dimension_semantics<parallel>, #tpu.dimension_semantics<parallel>], iteration_bounds = array<i64: 1, 1>, scalar_prefetch = 0 : i64, scratch_operands = 0 : i64, tpu.core_type = #tpu.core_type<tc>, window_params = [{transform_indices = @transform_0, window_bounds = array<i64: 8, 256>}, {transform_indices = @transform_1, window_bounds = array<i64: 8, 256>}, {transform_indices = @transform_2, window_bounds = array<i64: 8, 256>}]} {
    %c0 = arith.constant 0 : index
    %c0_0 = arith.constant 0 : index
    %0 = vector.load %arg2[%c0, %c0_0] : memref<8x256xf32, #tpu.memory_space<vmem>>, vector<8x256xf32>
    %c0_1 = arith.constant 0 : index
    %c0_2 = arith.constant 0 : index
    %1 = vector.load %arg3[%c0_1, %c0_2] : memref<8x256xf32, #tpu.memory_space<vmem>>, vector<8x256xf32>
    %2 = arith.addf %0, %1 : vector<8x256xf32>
    %c0_3 = arith.constant 0 : index
    %c0_4 = arith.constant 0 : index
    %3 = vector.load %arg4[%c0_3, %c0_4] : memref<8x256xf32, #tpu.memory_space<vmem>>, vector<8x256xf32>
    tpu.vector_store %arg4[%c0_3, %c0_4], %2 {strides = array<i32>} : memref<8x256xf32, #tpu.memory_space<vmem>>, vector<8x256xf32>,
    return
  }
  func.func @transform_0(%arg0: i32, %arg1: i32) -> (i32, i32) {
    %c0_i32 = arith.constant 0 : i32
    return %arg0, %arg1 : i32, i32
  }
  func.func @transform_1(%arg0: i32, %arg1: i32) -> (i32, i32) {
    %c0_i32 = arith.constant 0 : i32
    return %arg0, %arg1 : i32, i32
  }
  func.func @transform_2(%arg0: i32, %arg1: i32) -> (i32, i32) {
    %c0_i32 = arith.constant 0 : i32
    return %arg0, %arg1 : i32, i32
  }
}

</mosaic_0001>

<llo_original>
// kernel: pallas_sum.1
$region0: #{pallas_sum.1}
  #allocation0 [shape = 'u32[]', space=smem, size = 0x4, offset = 0x4, fixed_abs, tag = 'smem constant byte address 0x4 - core index']
  #allocation1 [shape = 'u32[144,128]{1,0:T(1,128)}', space=vmem, size = 0x12000, scoped, tag = 'internal scratch']
  %s0 = inlined_call_operand.vmem [shape: f32[8,256], index: 0, kind: input, shape index: {}]
  %s1 = inlined_call_operand.vmem [shape: f32[8,256], index: 1, kind: input, shape index: {}, may-alias: {1,2}]
  %s2 = inlined_call_operand.vmem [shape: f32[8,256], index: 2, kind: output, shape index: {}, may-alias: {1,2}]
  %s3 = sld [smem:[#allocation0]]
  $region18: #{pallas_sum.1} parent=0
    _
  %s5 = ssub.s32 1, %s3
  %s6 = scalar_select 0, %s5, %s3
  // Predicated region
  $region2: #{pallas_sum.1} parent=0 // pred_check
    _
  $region3: #{pallas_sum.1} parent=0 // pred_check_branch
    %8 = sbr.rel (0) target = $region5
  $region4: #{pallas_sum.1} parent=0 // pred_region
    _
  $region5: #{pallas_sum.1} parent=0 // pred_fallthru
    _
  // Predicated region
  $region6: #{pallas_sum.1} parent=0 // pred_check
    _
  $region7: #{pallas_sum.1} parent=0 // pred_check_branch
    %10 = sbr.rel (0) target = $region9
  $region8: #{pallas_sum.1} parent=0 // pred_region
    _
  $region9: #{pallas_sum.1} parent=0 // pred_fallthru
    _
  %v11 = vld [vmem:[%s0] sm:$0xff]
  %v12 = vld [vmem:[%s0 + $0x8] sm:$0xff]
  %v13 = vld [vmem:[%s1] sm:$0xff]
  %v14 = vld [vmem:[%s1 + $0x8] sm:$0xff]
  %v15 = vadd.f32 %v11, %v13
  %v16 = vadd.f32 %v12, %v14
  %17 = vst [vmem:[%s2] sm:$0xff] %v15
  %18 = vst [vmem:[%s2 + $0x8] sm:$0xff] %v16
  // Predicated region
  $region10: #{pallas_sum.1} parent=0 // pred_check
    _
  $region11: #{pallas_sum.1} parent=0 // pred_check_branch
    %20 = sbr.rel (0) target = $region13
  $region12: #{pallas_sum.1} parent=0 // pred_region
    _
  $region13: #{pallas_sum.1} parent=0 // pred_fallthru
    _
  // Predicated region
  $region14: #{pallas_sum.1} parent=0 // pred_check
    _
  $region15: #{pallas_sum.1} parent=0 // pred_check_branch
    %22 = sbr.rel (0) target = $region17
  $region16: #{pallas_sum.1} parent=0 // pred_region
    _
  $region17: #{pallas_sum.1} parent=0 // pred_fallthru
    _

</llo_original>
